<compile_context>
chip_gen: v7x
topology: tpu7x:2x2x1
jax: 0.10.0
libtpu: 0.0.40
codegen_flags: <defaults>
</compile_context>

<pallas_src>
import functools
import math

import jax
import jax.numpy as jnp
from jax.experimental import pallas as pl
from jax.experimental.pallas import tpu as pltpu

EPS = 1e-5


# ---------------------------------------------------------------------------
# Kernels
# ---------------------------------------------------------------------------
def _revin_norm_kernel(x_ref, w_ref, b_ref, y_ref, mean_ref, std_ref):
    """Fused stats + normalize; whole time axis resident in the block."""
    x = x_ref[...].astype(jnp.float32)                      # (Bb, T, C)
    inv_t = 1.0 / x.shape[1]
    # Single-pass sums: no centered (Bb,T,C) temp kept live alongside y.
    s1 = jnp.sum(x, axis=1, keepdims=True)                  # (Bb, 1, C)
    s2 = jnp.sum(x * x, axis=1, keepdims=True)              # (Bb, 1, C)
    mean = s1 * inv_t
    var = jnp.maximum(s2 * inv_t - mean * mean, 0.0)
    std = jnp.sqrt(var + EPS)                               # matches torch
    inv_std = jax.lax.rsqrt(var + EPS)                      # EUP, tiny vector
    w = w_ref[...].astype(jnp.float32)                      # (1, 1, C)
    b = b_ref[...].astype(jnp.float32)                      # (1, 1, C)
    scale = w * inv_std                                     # (Bb, 1, C)
    shift = b - mean * scale                                # (Bb, 1, C)
    y_ref[...] = (x * scale + shift).astype(y_ref.dtype)    # hot loop: mul+add
    mean_ref[...] = mean
    std_ref[...] = std


def _revin_stats_kernel(x_ref, mean_ref, std_ref, s1_ref, s2_ref, *, t_total):
    """Streaming (T-tiled) pass 1: accumulate sum / sum-of-squares."""
    t = pl.program_id(1)

    @pl.when(t == 0)
    def _():
        s1_ref[...] = jnp.zeros_like(s1_ref)
        s2_ref[...] = jnp.zeros_like(s2_ref)

    x = x_ref[...].astype(jnp.float32)                      # (Bb, Tb, C)
    s1_ref[...] += jnp.sum(x, axis=1, keepdims=True)
    s2_ref[...] += jnp.sum(x * x, axis=1, keepdims=True)

    @pl.when(t == pl.num_programs(1) - 1)
    def _():
        inv_t = 1.0 / t_total
        mean = s1_ref[...] * inv_t
        var = jnp.maximum(s2_ref[...] * inv_t - mean * mean, 0.0)
        mean_ref[...] = mean
        std_ref[...] = jnp.sqrt(var + EPS)


def _revin_apply_norm_kernel(x_ref, mean_ref, std_ref, w_ref, b_ref, y_ref):
    """Streaming pass 2: y = (x - mean)/std * w + b, as one mul+add."""
    x = x_ref[...].astype(jnp.float32)
    mean = mean_ref[...]
    std = std_ref[...]
    w = w_ref[...].astype(jnp.float32)
    b = b_ref[...].astype(jnp.float32)
    scale = w * pl.reciprocal(std, approx=False)            # (Bb, 1, C)
    shift = b - mean * scale                                # (Bb, 1, C)
    y_ref[...] = (x * scale + shift).astype(y_ref.dtype)


def _revin_denorm_kernel(x_ref, mean_ref, std_ref, w_ref, b_ref, y_ref):
    """y = ((x - b) / (w + eps^2)) * std + mean, divide hoisted to (.,1,C)."""
    x = x_ref[...].astype(jnp.float32)
    mean = mean_ref[...].astype(jnp.float32)
    std = std_ref[...].astype(jnp.float32)
    w = w_ref[...].astype(jnp.float32)
    b = b_ref[...].astype(jnp.float32)
    inv_w = pl.reciprocal(w + EPS * EPS, approx=False)      # (1, 1, C)
    scale = std * inv_w                                     # (Bb, 1, C)
    shift = mean - b * scale                                # (Bb, 1, C)
    y_ref[...] = (x * scale + shift).astype(y_ref.dtype)


# ---------------------------------------------------------------------------
# Sizing helpers (generation-aware, padded-footprint accounting)
# ---------------------------------------------------------------------------
def _round_up(x, m):
    return ((x + m - 1) // m) * m


def _vmem_budget_bytes():
    """~75% of per-core VMEM (48 MiB v7x, 96 MiB v5e/v6e), capped at 100 MiB."""
    cap = 64 * 2**20                       # conservative default (v7x per-core)
    try:
        cap = int(pltpu.get_tpu_info().vmem_capacity_bytes)
    except Exception:
        pass
    return int(min(cap * 3 // 4, 100 * 2**20))


def _target_block_bytes(budget):
    """Per-step block target: amortizes the ~0.35us grid-step overhead."""
    return int(min(6 * 2**20, budget // 12))


def _pick_blocks(Bk, T, C, budget, target):
    """Choose (Bb, Tb, fused) from the PADDED f32 footprint.

    fused=True means the whole time axis fits in one block (single-pass norm).
    """
    cpad = _round_up(C, 128)                  # lane padding
    row_bytes = cpad * 4                      # f32 accounting (kernel upcasts)
    per_batch = _round_up(T, 8) * row_bytes   # sublane-padded full-T slab
    # ~8x block: double-buffered in + out (counted at 4 B/elem) + ~2 f32 temps.
    if 8 * per_batch <= budget:
        Bb = max(1, min(Bk, target // per_batch, budget // (8 * per_batch)))
        # Keep >= 2 grid steps so ("parallel",) can shard over v7x's 2 cores.
        if Bb >= Bk and Bk >= 2:
            Bb = (Bk + 1) // 2
        return int(Bb), int(T), True
    # Streaming fallback: one batch row per block, tile T in multiples of 8.
    max_rows = max(8, (min(target, budget // 8) // row_bytes) // 8 * 8)
    Tb = min(_round_up(T, 8), max_rows)
    return 1, int(Tb), False


def _pad_axis(x, axis, new_size):
    pad = new_size - x.shape[axis]
    if pad == 0:
        return x
    widths = [(0, 0)] * x.ndim
    widths[axis] = (0, pad)
    return jnp.pad(x, widths)


# ---------------------------------------------------------------------------
# Lane-folding for small C (stats are per-(batch,channel) so it is lossless)
# ---------------------------------------------------------------------------
def _fold_group(B, C):
    if C % 128 == 0:
        return 1
    g = 128 // math.gcd(C, 128)
    return g if (g > 1 and g <= B) else 1


def _fold(x, g):
    """(B, T, C) -> (ceil(B/g), T, g*C); pads B with zeros if needed."""
    B, T, C = x.shape
    Bp = _round_up(B, g)
    x = _pad_axis(x, 0, Bp)
    return x.reshape(Bp // g, g, T, C).transpose(0, 2, 1, 3).reshape(Bp // g, T, g * C)


def _unfold(xf, g, B, T, C):
    Bg = xf.shape[0]
    x = xf.reshape(Bg, T, g, C).transpose(0, 2, 1, 3).reshape(Bg * g, T, C)
    return x[:B]


# ---------------------------------------------------------------------------
# Public wrappers
# ---------------------------------------------------------------------------
def revin_norm(x, affine_weight, affine_bias, *, fold_lanes=True,
               block_budget_bytes=None):
    """x: (B, T, C); affine_weight/bias: (C,). Returns (y, mean, stdev)."""
    B, T, C = x.shape
    g = _fold_group(B, C) if fold_lanes else 1
    if g > 1:
        xk = _fold(x, g)
        wk = jnp.tile(affine_weight, g)
        bk = jnp.tile(affine_bias, g)
    else:
        xk, wk, bk = x, affine_weight, affine_bias
    Bk, Tk, Ck = xk.shape

    vmem_limit = _vmem_budget_bytes()
    budget = int(block_budget_bytes) if block_budget_bytes else vmem_limit
    target = _target_block_bytes(budget)
    Bb, Tb, fused = _pick_blocks(Bk, Tk, Ck, budget, target)

    Bp = _round_up(Bk, Bb)                  # pad batch; rows are independent
    xk = _pad_axis(xk, 0, Bp)
    w3 = wk.reshape(1, 1, Ck)
    b3 = bk.reshape(1, 1, Ck)

    if fused:
        y, mean, std = pl.pallas_call(
            _revin_norm_kernel,
            out_shape=(
                jax.ShapeDtypeStruct((Bp, Tk, Ck), x.dtype),
                jax.ShapeDtypeStruct((Bp, 1, Ck), jnp.float32),
                jax.ShapeDtypeStruct((Bp, 1, Ck), jnp.float32),
            ),
            grid_spec=pltpu.PrefetchScalarGridSpec(
                num_scalar_prefetch=0,
                grid=(Bp // Bb,),
                in_specs=[
                    pl.BlockSpec((Bb, Tk, Ck), lambda i: (i, 0, 0)),
                    pl.BlockSpec((1, 1, Ck), lambda i: (0, 0, 0)),
                    pl.BlockSpec((1, 1, Ck), lambda i: (0, 0, 0)),
                ],
                out_specs=[
                    pl.BlockSpec((Bb, Tk, Ck), lambda i: (i, 0, 0)),
                    pl.BlockSpec((Bb, 1, Ck), lambda i: (i, 0, 0)),
                    pl.BlockSpec((Bb, 1, Ck), lambda i: (i, 0, 0)),
                ],
            ),
            compiler_params=pltpu.CompilerParams(
                dimension_semantics=("parallel",),
                vmem_limit_bytes=vmem_limit),
        )(xk, w3, b3)
    else:
        # Streaming two-pass path for long sequences.
        Tp = _round_up(Tk, Tb)
        xs = _pad_axis(xk, 1, Tp)           # zero pad: sums unaffected
        mean, std = pl.pallas_call(
            functools.partial(_revin_stats_kernel, t_total=Tk),
            out_shape=(
                jax.ShapeDtypeStruct((Bp, 1, Ck), jnp.float32),
                jax.ShapeDtypeStruct((Bp, 1, Ck), jnp.float32),
            ),
            grid_spec=pltpu.PrefetchScalarGridSpec(
                num_scalar_prefetch=0,
                grid=(Bp // Bb, Tp // Tb),
                in_specs=[pl.BlockSpec((Bb, Tb, Ck), lambda i, t: (i, t, 0))],
                out_specs=[
                    pl.BlockSpec((Bb, 1, Ck), lambda i, t: (i, 0, 0)),
                    pl.BlockSpec((Bb, 1, Ck), lambda i, t: (i, 0, 0)),
                ],
                scratch_shapes=[
                    pltpu.VMEM((Bb, 1, Ck), jnp.float32),
                    pltpu.VMEM((Bb, 1, Ck), jnp.float32),
                ],
            ),
            compiler_params=pltpu.CompilerParams(
                dimension_semantics=("parallel", "arbitrary"),
                vmem_limit_bytes=vmem_limit),
        )(xs)
        y = pl.pallas_call(
            _revin_apply_norm_kernel,
            out_shape=jax.ShapeDtypeStruct((Bp, Tp, Ck), x.dtype),
            grid_spec=pltpu.PrefetchScalarGridSpec(
                num_scalar_prefetch=0,
                grid=(Bp // Bb, Tp // Tb),
                in_specs=[
                    pl.BlockSpec((Bb, Tb, Ck), lambda i, t: (i, t, 0)),
                    pl.BlockSpec((Bb, 1, Ck), lambda i, t: (i, 0, 0)),
                    pl.BlockSpec((Bb, 1, Ck), lambda i, t: (i, 0, 0)),
                    pl.BlockSpec((1, 1, Ck), lambda i, t: (0, 0, 0)),
                    pl.BlockSpec((1, 1, Ck), lambda i, t: (0, 0, 0)),
                ],
                out_specs=pl.BlockSpec((Bb, Tb, Ck), lambda i, t: (i, t, 0)),
            ),
            compiler_params=pltpu.CompilerParams(
                dimension_semantics=("parallel", "parallel"),
                vmem_limit_bytes=vmem_limit),
        )(xs, mean, std, w3, b3)
        y = y[:, :Tk, :]

    # Strip batch padding, then unfold.
    y, mean, std = y[:Bk], mean[:Bk], std[:Bk]
    if g > 1:
        y = _unfold(y, g, B, T, C)
        mean = _unfold(mean, g, B, 1, C)
        std = _unfold(std, g, B, 1, C)
    return y, mean, std


def revin_denorm(x, mean, std, affine_weight, affine_bias, *, fold_lanes=True,
                 block_budget_bytes=None):
    """Inverse of revin_norm. x: (B, T, C); mean/std: (B, 1, C)."""
    B, T, C = x.shape
    g = _fold_group(B, C) if fold_lanes else 1
    if g > 1:
        xk = _fold(x, g)
        mk = _fold(mean, g)
        sk = _fold(std, g)
        wk = jnp.tile(affine_weight, g)
        bk = jnp.tile(affine_bias, g)
    else:
        xk, mk, sk, wk, bk = x, mean, std, affine_weight, affine_bias
    Bk, Tk, Ck = xk.shape

    vmem_limit = _vmem_budget_bytes()
    budget = int(block_budget_bytes) if block_budget_bytes else vmem_limit
    target = _target_block_bytes(budget)
    Bb, Tb, _ = _pick_blocks(Bk, Tk, Ck, budget, target)

    Bp = _round_up(Bk, Bb)
    Tp = _round_up(Tk, Tb)
    xk = _pad_axis(_pad_axis(xk, 0, Bp), 1, Tp)
    mk = _pad_axis(mk, 0, Bp)
    sk = _pad_axis(sk, 0, Bp)
    w3 = wk.reshape(1, 1, Ck)
    b3 = bk.reshape(1, 1, Ck)

    y = pl.pallas_call(
        _revin_denorm_kernel,
        out_shape=jax.ShapeDtypeStruct((Bp, Tp, Ck), x.dtype),
        grid_spec=pltpu.PrefetchScalarGridSpec(
            num_scalar_prefetch=0,
            grid=(Bp // Bb, Tp // Tb),
            in_specs=[
                pl.BlockSpec((Bb, Tb, Ck), lambda i, t: (i, t, 0)),
                pl.BlockSpec((Bb, 1, Ck), lambda i, t: (i, 0, 0)),
                pl.BlockSpec((Bb, 1, Ck), lambda i, t: (i, 0, 0)),
                pl.BlockSpec((1, 1, Ck), lambda i, t: (0, 0, 0)),
                pl.BlockSpec((1, 1, Ck), lambda i, t: (0, 0, 0)),
            ],
            out_specs=pl.BlockSpec((Bb, Tb, Ck), lambda i, t: (i, t, 0)),
        ),
        compiler_params=pltpu.CompilerParams(
            dimension_semantics=("parallel", "parallel"),
            vmem_limit_bytes=vmem_limit),
    )(xk, mk, sk, w3, b3)

    y = y[:Bk, :Tk, :]
    if g > 1:
        y = _unfold(y, g, B, T, C)
    else:
        y = y[:B]
    return y


# ---------------------------------------------------------------------------
# Reference (plain JAX) for verification
# ---------------------------------------------------------------------------
def _ref_norm(x, w, b):
    mean = jnp.mean(x, axis=1, keepdims=True)
    var = jnp.mean((x - mean) ** 2, axis=1, keepdims=True)
    std = jnp.sqrt(var + EPS)
    y = (x - mean) / std * w + b
    return y, mean, std


def _ref_denorm(x, mean, std, w, b):
    y = (x - b) / (w + EPS * EPS)
    return y * std + mean


if __name__ == "__main__":
    def _check(B, T, C, key, block_budget_bytes=None):
        k1, k2, k3 = jax.random.split(key, 3)
        x = jax.random.normal(k1, (B, T, C), dtype=jnp.float32) * 2.0 + 0.5
        w = 1.0 + 0.1 * jax.random.normal(k2, (C,), dtype=jnp.float32)
        b = 0.05 * jax.random.normal(k3, (C,), dtype=jnp.float32)

        y, mean, std = revin_norm(x, w, b, block_budget_bytes=block_budget_bytes)
        x_rec = revin_denorm(y, mean, std, w, b,
                             block_budget_bytes=block_budget_bytes)
        jax.block_until_ready((y, mean, std, x_rec))

        y_ref, mean_ref, std_ref = _ref_norm(x, w, b)
        x_rec_ref = _ref_denorm(y_ref, mean_ref, std_ref, w, b)

        assert jnp.allclose(y, y_ref, atol=1e-5, rtol=1e-5)
        assert jnp.allclose(mean, mean_ref, atol=1e-5, rtol=1e-5)
        assert jnp.allclose(std, std_ref, atol=1e-5, rtol=1e-5)
        assert jnp.allclose(x_rec, x_rec_ref, atol=1e-4, rtol=1e-4)
        assert jnp.allclose(x_rec, x, atol=1e-4, rtol=1e-4)   # round trip

    key = jax.random.PRNGKey(0)
    k0, k1, k2, k3 = jax.random.split(key, 4)
    # Small case: no lane-fold, fused single-pass path.
    _check(2, 16, 8, k0)
    # Lane-folded case: (32, 24, 8) folds to lane-dense (2, 24, 128) blocks.
    _check(32, 24, 8, k1)
    # Non-divisor batch: exercises batch padding (Bb=3, B padded 5 -> 6).
    _check(5, 24, 8, k2)
    # Forced streaming (T-tiled two-pass) path via a tiny block budget.
    _check(2, 64, 8, k3, block_budget_bytes=100_000)

    print("KERNEL_OK")
</pallas_src>

<mosaic_0001>
module attributes {stable_mosaic.version = 11 : i64} {
  func.func @_revin_norm_kernel(%arg0: i32, %arg1: memref<1x16x8xf32, #tpu.memory_space<vmem>>, %arg2: memref<1x1x8xf32, #tpu.memory_space<vmem>>, %arg3: memref<1x1x8xf32, #tpu.memory_space<vmem>>, %arg4: memref<1x16x8xf32, #tpu.memory_space<vmem>>, %arg5: memref<1x1x8xf32, #tpu.memory_space<vmem>>, %arg6: memref<1x1x8xf32, #tpu.memory_space<vmem>>) attributes {dimension_semantics = [#tpu.dimension_semantics<parallel>], iteration_bounds = array<i64: 2>, scalar_prefetch = 0 : i64, scratch_operands = 0 : i64, tpu.core_type = #tpu.core_type<tc>, window_params = [{transform_indices = @transform_0, window_bounds = array<i64: 1, 16, 8>}, {pipeline_mode = #tpu.pipeline_mode<synchronous>, transform_indices = @transform_1, window_bounds = array<i64: 1, 1, 8>}, {pipeline_mode = #tpu.pipeline_mode<synchronous>, transform_indices = @transform_2, window_bounds = array<i64: 1, 1, 8>}, {transform_indices = @transform_3, window_bounds = array<i64: 1, 16, 8>}, {transform_indices = @transform_4, window_bounds = array<i64: 1, 1, 8>}, {transform_indices = @transform_5, window_bounds = array<i64: 1, 1, 8>}]} {
    %c0 = arith.constant 0 : index
    %c0_0 = arith.constant 0 : index
    %c0_1 = arith.constant 0 : index
    %0 = vector.load %arg1[%c0, %c0_0, %c0_1] : memref<1x16x8xf32, #tpu.memory_space<vmem>>, vector<1x16x8xf32>
    %cst = arith.constant dense<0.000000e+00> : vector<1x8xf32>
    %1 = vector.multi_reduction <add>, %0, %cst [1] : vector<1x16x8xf32> to vector<1x8xf32>
    %2 = vector.shape_cast %1 : vector<1x8xf32> to vector<1x1x8xf32>
    %3 = arith.mulf %0, %0 : vector<1x16x8xf32>
    %cst_2 = arith.constant dense<0.000000e+00> : vector<1x8xf32>
    %4 = vector.multi_reduction <add>, %3, %cst_2 [1] : vector<1x16x8xf32> to vector<1x8xf32>
    %5 = vector.shape_cast %4 : vector<1x8xf32> to vector<1x1x8xf32>
    %cst_3 = arith.constant 6.250000e-02 : f32
    %6 = vector.broadcast %cst_3 : f32 to vector<1x1x8xf32>
    %7 = arith.mulf %2, %6 : vector<1x1x8xf32>
    %cst_4 = arith.constant 6.250000e-02 : f32
    %8 = vector.broadcast %cst_4 : f32 to vector<1x1x8xf32>
    %9 = arith.mulf %5, %8 : vector<1x1x8xf32>
    %10 = arith.mulf %7, %7 : vector<1x1x8xf32>
    %11 = arith.subf %9, %10 : vector<1x1x8xf32>
    %cst_5 = arith.constant 0.000000e+00 : f32
    %12 = vector.broadcast %cst_5 : f32 to vector<1x1x8xf32>
    %13 = arith.maximumf %11, %12 : vector<1x1x8xf32>
    %cst_6 = arith.constant 9.99999974E-6 : f32
    %14 = vector.broadcast %cst_6 : f32 to vector<1x1x8xf32>
    %15 = arith.addf %13, %14 : vector<1x1x8xf32>
    %16 = math.sqrt %15 : vector<1x1x8xf32>
    %cst_7 = arith.constant 9.99999974E-6 : f32
    %17 = vector.broadcast %cst_7 : f32 to vector<1x1x8xf32>
    %18 = arith.addf %13, %17 : vector<1x1x8xf32>
    %19 = math.rsqrt %18 : vector<1x1x8xf32>
    %c0_8 = arith.constant 0 : index
    %c0_9 = arith.constant 0 : index
    %c0_10 = arith.constant 0 : index
    %20 = vector.load %arg2[%c0_8, %c0_9, %c0_10] : memref<1x1x8xf32, #tpu.memory_space<vmem>>, vector<1x1x8xf32>
    %c0_11 = arith.constant 0 : index
    %c0_12 = arith.constant 0 : index
    %c0_13 = arith.constant 0 : index
    %21 = vector.load %arg3[%c0_11, %c0_12, %c0_13] : memref<1x1x8xf32, #tpu.memory_space<vmem>>, vector<1x1x8xf32>
    %22 = arith.mulf %20, %19 : vector<1x1x8xf32>
    %23 = arith.mulf %7, %22 : vector<1x1x8xf32>
    %24 = arith.subf %21, %23 : vector<1x1x8xf32>
    %25 = vector.broadcast %22 : vector<1x1x8xf32> to vector<1x16x8xf32>
    %26 = arith.mulf %0, %25 : vector<1x16x8xf32>
    %27 = vector.broadcast %24 : vector<1x1x8xf32> to vector<1x16x8xf32>
    %28 = arith.addf %26, %27 : vector<1x16x8xf32>
    %c0_14 = arith.constant 0 : index
    %c0_15 = arith.constant 0 : index
    %c0_16 = arith.constant 0 : index
    %29 = vector.load %arg4[%c0_14, %c0_15, %c0_16] : memref<1x16x8xf32, #tpu.memory_space<vmem>>, vector<1x16x8xf32>
    tpu.vector_store %arg4[%c0_14, %c0_15, %c0_16], %28 {strides = array<i32>} : memref<1x16x8xf32, #tpu.memory_space<vmem>>, vector<1x16x8xf32>,
    %c0_17 = arith.constant 0 : index
    %c0_18 = arith.constant 0 : index
    %c0_19 = arith.constant 0 : index
    %30 = vector.load %arg5[%c0_17, %c0_18, %c0_19] : memref<1x1x8xf32, #tpu.memory_space<vmem>>, vector<1x1x8xf32>
    tpu.vector_store %arg5[%c0_17, %c0_18, %c0_19], %7 {strides = array<i32>} : memref<1x1x8xf32, #tpu.memory_space<vmem>>, vector<1x1x8xf32>,
    %c0_20 = arith.constant 0 : index
    %c0_21 = arith.constant 0 : index
    %c0_22 = arith.constant 0 : index
    %31 = vector.load %arg6[%c0_20, %c0_21, %c0_22] : memref<1x1x8xf32, #tpu.memory_space<vmem>>, vector<1x1x8xf32>
    tpu.vector_store %arg6[%c0_20, %c0_21, %c0_22], %16 {strides = array<i32>} : memref<1x1x8xf32, #tpu.memory_space<vmem>>, vector<1x1x8xf32>,
    return
  }
  func.func @transform_0(%arg0: i32) -> (i32, i32, i32) {
    %c0_i32 = arith.constant 0 : i32
    %c0_i32_0 = arith.constant 0 : i32
    %c0_i32_1 = arith.constant 0 : i32
    return %arg0, %c0_i32, %c0_i32_0 : i32, i32, i32
  }
  func.func @transform_1(%arg0: i32) -> (i32, i32, i32) {
    %c0_i32 = arith.constant 0 : i32
    %c0_i32_0 = arith.constant 0 : i32
    %c0_i32_1 = arith.constant 0 : i32
    %c0_i32_2 = arith.constant 0 : i32
    return %c0_i32, %c0_i32_0, %c0_i32_1 : i32, i32, i32
  }
  func.func @transform_2(%arg0: i32) -> (i32, i32, i32) {
    %c0_i32 = arith.constant 0 : i32
    %c0_i32_0 = arith.constant 0 : i32
    %c0_i32_1 = arith.constant 0 : i32
    %c0_i32_2 = arith.constant 0 : i32
    return %c0_i32, %c0_i32_0, %c0_i32_1 : i32, i32, i32
  }
  func.func @transform_3(%arg0: i32) -> (i32, i32, i32) {
    %c0_i32 = arith.constant 0 : i32
    %c0_i32_0 = arith.constant 0 : i32
    %c0_i32_1 = arith.constant 0 : i32
    return %arg0, %c0_i32, %c0_i32_0 : i32, i32, i32
  }
  func.func @transform_4(%arg0: i32) -> (i32, i32, i32) {
    %c0_i32 = arith.constant 0 : i32
    %c0_i32_0 = arith.constant 0 : i32
    %c0_i32_1 = arith.constant 0 : i32
    return %arg0, %c0_i32, %c0_i32_0 : i32, i32, i32
  }
  func.func @transform_5(%arg0: i32) -> (i32, i32, i32) {
    %c0_i32 = arith.constant 0 : i32
    %c0_i32_0 = arith.constant 0 : i32
    %c0_i32_1 = arith.constant 0 : i32
    return %arg0, %c0_i32, %c0_i32_0 : i32, i32, i32
  }
}

</mosaic_0001>

<llo_original>
// kernel: tpu_custom_call.1
$region0: #{tpu_custom_call.1}
  #allocation0 [shape = 'u32[]', space=smem, size = 0x4, offset = 0x4, fixed_abs, tag = 'smem constant byte address 0x4 - core index']
  #allocation1 [shape = 'u32[144,128]{1,0:T(1,128)}', space=vmem, size = 0x12000, scoped, tag = 'internal scratch']
  %s0 = inlined_call_operand.vmem [shape: f32[2,16,8], index: 0, kind: input, shape index: {}]
  %s1 = inlined_call_operand.vmem [shape: f32[1,1,8], index: 1, kind: input, shape index: {}]
  %s2 = inlined_call_operand.vmem [shape: f32[1,1,8], index: 2, kind: input, shape index: {}]
  %s3 = inlined_call_operand.vmem [shape: f32[2,16,8], index: 3, kind: output, shape index: {0}]
  %s4 = inlined_call_operand.hbm [shape: f32[2,1,8], index: 4, kind: output, shape index: {1}]
  %s5 = inlined_call_operand.hbm [shape: f32[2,1,8], index: 5, kind: output, shape index: {2}]
  %6 = xla_tuple %s3, %s4, %s5
  %s7 = sld [smem:[#allocation0]]
  $region61: #{tpu_custom_call.1} parent=0
    _
  %s9 = ssub.s32 1, %s7
  %s10 = scalar_select 0, %s9, %s7
  $region1: #{tpu_custom_call.1} parent=0
    #allocation2 [shape = 'u8[1024]{0}', space=vmem, size = 0x400, scoped, tag = 'output window, operand 1']
    #allocation3 [shape = 's32[2]{0}', space=sflag, size = 0x8, scoped, tag = 'scoped memory for tpu_custom_call.1']
    #allocation4 [shape = 'u8[1024]{0}', space=vmem, size = 0x400, scoped, tag = 'output window, operand 2']
    #allocation5 [shape = 's32[2]{0}', space=sflag, size = 0x8, scoped, tag = 'scoped memory for tpu_custom_call.1']
    %11 = vsyncpa [#allocation3], 0
    %s12 = scalar_lea.sflag [#allocation3], 1
    %13 = vsyncpa %s12, 0
    %14 = vsyncpa [#allocation5], 0
    %s15 = scalar_lea.sflag [#allocation5], 1
    %16 = vsyncpa %s15, 0
    loop: start=0, step=1, limit=4
    $region2: #{tpu_custom_call.1} parent=1 // loop_pre_header
      _
    $region3: #{tpu_custom_call.1} parent=1 // loop_header
      %s18 = sphi 0, %s22
      %p19 = scmp.ge.s32.totalorder %s18, 4
      %s28 = sphi 0, %s30
      %s31 = sphi 0, %s28
      %s32 = sphi 0, %s31
      %s48 = sphi 0, %s32
      %s52 = sphi 0, %s52
      %s54 = sphi 0, %s52
      %s55 = sphi 0, %s54
      %s69 = sphi 0, %s55
      %s73 = sphi 0, %s73
      %s75 = sphi 0, %s73
      %s76 = sphi 0, %s75
      %s90 = sphi 0, %s76
      %s96 = sphi 0, %s98
      %s99 = sphi 0, %s96
      %s100 = sphi 0, %s99
      %s116 = sphi 0, %s100
      %s122 = sphi 0, %s124
      %s125 = sphi 0, %s122
      %s126 = sphi 0, %s125
      %s142 = sphi 0, %s126
      %s148 = sphi 0, %s150
      %s151 = sphi 0, %s148
      %s152 = sphi 0, %s151
      %s168 = sphi 0, %s152
    $region4: #{tpu_custom_call.1} parent=1 // loop_header_branch
      %21 = sbr.rel (%p19) target = $region8
    $region5: #{tpu_custom_call.1} parent=1 // loop_body
      %s23 = ssub.s32 %s18, 1
      %s24 = ssub.s32 %s18, 2
      %s25 = sadd.s32 %s18, 1
      %s26 = ssub.s32 %s18, %s25
      %p27 = scmp.eq.s32.totalorder %s26, 0
      %s29 = sadd.s32 %s28, 1
      %s30 = scalar_select %p27, %s28, %s29
      %p33 = pneg %p27
      %p34 = scmp.eq.s32.totalorder %s18, 1
      %p35 = por %p33, %p34
      %p36 = scmp.ne.s32.totalorder %s28, %s31
      %p37 = scmp.eq.s32.totalorder %s18, 0
      %p38 = por %p36, %p37
      %p39 = scmp.ne.s32.totalorder %s28, %s31
      %p40 = scmp.eq.s32.totalorder %s23, 1
      %p41 = por %p39, %p40
      %p42 = scmp.ne.s32.totalorder %s31, %s32
      %p43 = scmp.eq.s32.totalorder %s23, 0
      %p44 = por %p42, %p43
      %p45 = scmp.ne.s32.totalorder %s31, %s32
      %p46 = scmp.eq.s32.totalorder %s24, 1
      %p47 = por %p45, %p46
      %p49 = scmp.ne.s32.totalorder %s32, %s48
      %p50 = scmp.eq.s32.totalorder %s24, 0
      %p51 = por %p49, %p50
      %s53 = sadd.s32 %s52, 1
      %p56 = scmp.eq.s32.totalorder %s18, 1
      %p57 = scmp.ne.s32.totalorder %s52, %s54
      %p58 = scmp.eq.s32.totalorder %s18, 0
      %p59 = por %p57, %p58
      %p60 = scmp.ne.s32.totalorder %s52, %s54
      %p61 = scmp.eq.s32.totalorder %s23, 1
      %p62 = por %p60, %p61
      %p63 = scmp.ne.s32.totalorder %s54, %s55
      %p64 = scmp.eq.s32.totalorder %s23, 0
      %p65 = por %p63, %p64
      %p66 = scmp.ne.s32.totalorder %s54, %s55
      %p67 = scmp.eq.s32.totalorder %s24, 1
      %p68 = por %p66, %p67
      %p70 = scmp.ne.s32.totalorder %s55, %s69
      %p71 = scmp.eq.s32.totalorder %s24, 0
      %p72 = por %p70, %p71
      %s74 = sadd.s32 %s73, 1
      %p77 = scmp.eq.s32.totalorder %s18, 1
      %p78 = scmp.ne.s32.totalorder %s73, %s75
      %p79 = scmp.eq.s32.totalorder %s18, 0
      %p80 = por %p78, %p79
      %p81 = scmp.ne.s32.totalorder %s73, %s75
      %p82 = scmp.eq.s32.totalorder %s23, 1
      %p83 = por %p81, %p82
      %p84 = scmp.ne.s32.totalorder %s75, %s76
      %p85 = scmp.eq.s32.totalorder %s23, 0
      %p86 = por %p84, %p85
      %p87 = scmp.ne.s32.totalorder %s75, %s76
      %p88 = scmp.eq.s32.totalorder %s24, 1
      %p89 = por %p87, %p88
      %p91 = scmp.ne.s32.totalorder %s76, %s90
      %p92 = scmp.eq.s32.totalorder %s24, 0
      %p93 = por %p91, %p92
      %s94 = ssub.s32 %s18, %s25
      %p95 = scmp.eq.s32.totalorder %s94, 0
      %s97 = sadd.s32 %s96, 1
      %s98 = scalar_select %p95, %s96, %s97
      %p101 = pneg %p95
      %p102 = scmp.eq.s32.totalorder %s18, 1
      %p103 = por %p101, %p102
      %p104 = scmp.ne.s32.totalorder %s96, %s99
      %p105 = scmp.eq.s32.totalorder %s18, 0
      %p106 = por %p104, %p105
      %p107 = scmp.ne.s32.totalorder %s96, %s99
      %p108 = scmp.eq.s32.totalorder %s23, 1
      %p109 = por %p107, %p108
      %p110 = scmp.ne.s32.totalorder %s99, %s100
      %p111 = scmp.eq.s32.totalorder %s23, 0
      %p112 = por %p110, %p111
      %p113 = scmp.ne.s32.totalorder %s99, %s100
      %p114 = scmp.eq.s32.totalorder %s24, 1
      %p115 = por %p113, %p114
      %p117 = scmp.ne.s32.totalorder %s100, %s116
      %p118 = scmp.eq.s32.totalorder %s24, 0
      %p119 = por %p117, %p118
      %s120 = ssub.s32 %s18, %s25
      %p121 = scmp.eq.s32.totalorder %s120, 0
      %s123 = sadd.s32 %s122, 1
      %s124 = scalar_select %p121, %s122, %s123
      %p127 = pneg %p121
      %p128 = scmp.eq.s32.totalorder %s18, 1
      %p129 = por %p127, %p128
      %p130 = scmp.ne.s32.totalorder %s122, %s125
      %p131 = scmp.eq.s32.totalorder %s18, 0
      %p132 = por %p130, %p131
      %p133 = scmp.ne.s32.totalorder %s122, %s125
      %p134 = scmp.eq.s32.totalorder %s23, 1
      %p135 = por %p133, %p134
      %p136 = scmp.ne.s32.totalorder %s125, %s126
      %p137 = scmp.eq.s32.totalorder %s23, 0
      %p138 = por %p136, %p137
      %p139 = scmp.ne.s32.totalorder %s125, %s126
      %p140 = scmp.eq.s32.totalorder %s24, 1
      %p141 = por %p139, %p140
      %p143 = scmp.ne.s32.totalorder %s126, %s142
      %p144 = scmp.eq.s32.totalorder %s24, 0
      %p145 = por %p143, %p144
      %s146 = ssub.s32 %s18, %s25
      %p147 = scmp.eq.s32.totalorder %s146, 0
      %s149 = sadd.s32 %s148, 1
      %s150 = scalar_select %p147, %s148, %s149
      %p153 = pneg %p147
      %p154 = scmp.eq.s32.totalorder %s18, 1
      %p155 = por %p153, %p154
      %p156 = scmp.ne.s32.totalorder %s148, %s151
      %p157 = scmp.eq.s32.totalorder %s18, 0
      %p158 = por %p156, %p157
      %p159 = scmp.ne.s32.totalorder %s148, %s151
      %p160 = scmp.eq.s32.totalorder %s23, 1
      %p161 = por %p159, %p160
      %p162 = scmp.ne.s32.totalorder %s151, %s152
      %p163 = scmp.eq.s32.totalorder %s23, 0
      %p164 = por %p162, %p163
      %p165 = scmp.ne.s32.totalorder %s151, %s152
      %p166 = scmp.eq.s32.totalorder %s24, 1
      %p167 = por %p165, %p166
      %p169 = scmp.ne.s32.totalorder %s152, %s168
      %p170 = scmp.eq.s32.totalorder %s24, 0
      %p171 = por %p169, %p170
      %p172 = scmp.le.s32.totalorder 1, %s18
      %p173 = scmp.lt.s32.totalorder %s18, 3
      %p174 = pnand %p172, %p173
      %p175 = pneg %p174
      // Predicated region
      $region9: #{tpu_custom_call.1} parent=5 // pred_check
        _
      $region10: #{tpu_custom_call.1} parent=5 // pred_check_branch
        %177 = sbr.rel (%p174) target = $region12
      $region11: #{tpu_custom_call.1} parent=5 // pred_region
        %s178 = ssub.s32 %s18, 1
        // Predicated region
        $region13: #{tpu_custom_call.1} parent=11 // pred_check
          %p179 = pneg %p65
        $region14: #{tpu_custom_call.1} parent=11 // pred_check_branch
          %181 = sbr.rel (%p179) target = $region16
        $region15: #{tpu_custom_call.1} parent=11 // pred_region
          _
        $region16: #{tpu_custom_call.1} parent=11 // pred_fallthru
          _
        // Predicated region
        $region17: #{tpu_custom_call.1} parent=11 // pred_check
          %p182 = pneg %p86
        $region18: #{tpu_custom_call.1} parent=11 // pred_check_branch
          %184 = sbr.rel (%p182) target = $region20
        $region19: #{tpu_custom_call.1} parent=11 // pred_region
          _
        $region20: #{tpu_custom_call.1} parent=11 // pred_fallthru
          _
      $region12: #{tpu_custom_call.1} parent=5 // pred_fallthru
        _
      %p185 = scmp.lt.s32.totalorder %s18, 2
      // Predicated region
      $region21: #{tpu_custom_call.1} parent=5 // pred_check
        %p186 = pneg %p185
      $region22: #{tpu_custom_call.1} parent=5 // pred_check_branch
        %188 = sbr.rel (%p186) target = $region24
      $region23: #{tpu_custom_call.1} parent=5 // pred_region
        // Predicated region
        $region25: #{tpu_custom_call.1} parent=23 // pred_check
          %p189 = pneg %p38
        $region26: #{tpu_custom_call.1} parent=23 // pred_check_branch
          %191 = sbr.rel (%p189) target = $region28
        $region27: #{tpu_custom_call.1} parent=23 // pred_region
          %p192 = scmp.lt.s32.totalorder %s18, 1
          %s193 = scalar_select %p192, %s18, 1
          %s194 = smul.addr %s193, 2
          %s195 = smul.addr %s194, 8
          %s196 = scalar_lea.vmem %s0, %s195
        $region28: #{tpu_custom_call.1} parent=23 // pred_fallthru
          _
      $region24: #{tpu_custom_call.1} parent=5 // pred_fallthru
        _
      %p197 = scmp.le.s32.totalorder 1, %s18
      %p198 = scmp.lt.s32.totalorder %s18, 3
      %p199 = pnand %p197, %p198
      %p200 = pneg %p199
      // Predicated region
      $region29: #{tpu_custom_call.1} parent=5 // pred_check
        _
      $region30: #{tpu_custom_call.1} parent=5 // pred_check_branch
        %202 = sbr.rel (%p199) target = $region32
      $region31: #{tpu_custom_call.1} parent=5 // pred_region
        %s203 = ssub.s32 %s18, 1
        %p204 = scmp.lt.s32.totalorder %s23, 1
        %s205 = scalar_select %p204, %s23, 1
        %s206 = smul.addr %s205, 2
        %s207 = smul.addr %s206, 8
        %s208 = scalar_lea.vmem %s0, %s207
        %p209 = pneg %p44
        %p210 = pneg %p41
        %p211 = pneg %p65
        %p212 = pneg %p62
        %p213 = pneg %p86
        %p214 = pneg %p83
        %p215 = pneg %p112
        %p216 = pneg %p109
        %p217 = scmp.lt.s32.totalorder %s23, 1
        %s218 = scalar_select %p217, %s23, 1
        %s219 = smul.addr %s218, 2
        %s220 = smul.addr %s219, 8
        %s221 = scalar_lea.vmem %s3, %s220
        %p222 = pneg %p138
        %p223 = pneg %p135
        %s224 = sand.u32 %s125, 1
        %s225 = scalar_lea.sflag [#allocation3], %s224
        %s226 = sand.u32 %s125, 1
        %s227 = scalar_lea.vmem [#allocation2], %s226
        %p228 = pneg %p164
        %p229 = pneg %p161
        %s230 = sand.u32 %s151, 1
        %s231 = scalar_lea.sflag [#allocation5], %s230
        %s232 = sand.u32 %s151, 1
        %s233 = scalar_lea.vmem [#allocation4], %s232
        %p234 = scmp.lt.s32.totalorder %s23, 1
        %s235 = scalar_select %p234, %s23, 1
        %s236 = smul.addr %s235, 2
        %s237 = smul.addr %s236, 8
        %s238 = scalar_lea.vmem %s0, %s237
        %p239 = scmp.lt.s32.totalorder %s23, 1
        %s240 = scalar_select %p239, %s23, 1
        %s241 = smul.addr %s240, 2
        %s242 = smul.addr %s241, 8
        %s243 = scalar_lea.vmem %s3, %s242
        %v244 = vld [vmem:[%s238] sm:$0xff]
        %v245 = vld [vmem:[%s238 + $0x8] sm:$0xff]
        %vm246 = vcmask 64512
        %v247 = vsel %vm246, %v244, 0.0
        %v248 = vsel %vm246, %v245, 0.0
        %v249 = vadd.f32 %v247, %v248
        %v250 = vrot.slane %v249, 4
        %v251 = vadd.f32 %v249, %v250
        %v252 = vrot.slane %v251, 2
        %v253 = vadd.f32 %v251, %v252
        %v254 = vrot.slane %v253, 1
        %v255 = vadd.f32 %v253, %v254
        %v256 = vmul.f32 %v244, %v244
        %v257 = vmul.f32 %v245, %v245
        %v258 = vsel %vm246, %v256, 0.0
        %v259 = vsel %vm246, %v257, 0.0
        %v260 = vadd.f32 %v258, %v259
        %v261 = vrot.slane %v260, 4
        %v262 = vadd.f32 %v260, %v261
        %v263 = vrot.slane %v262, 2
        %v264 = vadd.f32 %v262, %v263
        %v265 = vrot.slane %v264, 1
        %v266 = vadd.f32 %v264, %v265
        %v267 = vmul.f32 %v255, 0.0625
        %v268 = vmul.f32 %v266, 0.0625
        %v269 = vmul.f32 %v267, %v267
        %v270 = vsub.f32 %v268, %v269
        %v271 = vmax.f32 %v270, 0.0
        %v272 = vadd.f32 %v271, 1e-05
        %v273 = vrsqrt.pop %v272
        %v274 = vmul.f32 %v272, %v273
        %vm275 = vcmp.eq.f32.partialorder %v272, inf
        %v276 = vsel %vm275, %v272, %v274
        %vm277 = vcmp.eq.f32.partialorder %v272, 0.0
        %v278 = vand.u32 %v272, 2147483648
        %v279 = vsel %vm277, %v278, %v276
        %v280 = vrsqrt.pop %v272
        %v281 = vld [vmem:[%s1] sm:$0x1]
        %v282 = vld [vmem:[%s2] sm:$0x1]
        %v283 = vmul.f32 %v281, %v280
        %v284 = vmul.f32 %v267, %v283
        %v285 = vsub.f32 %v282, %v284
        %v287 = vlaneseq
        %v288 = vshrl.u32 %v287, 7
        %v289 = vsub.s32 0, %v288
        %v290 = vrot.slane %v283, %v289
        %v292 = vmul.f32 %v244, %v290
        %v293 = vmul.f32 %v245, %v290
        %v295 = vlaneseq
        %v296 = vshrl.u32 %v295, 7
        %v297 = vsub.s32 0, %v296
        %v298 = vrot.slane %v285, %v297
        %v300 = vadd.f32 %v292, %v298
        %v301 = vadd.f32 %v293, %v298
        %302 = vst.msk [vmem:[%s243] sm:$0xff] %vm246, %v300
        %303 = vst.msk [vmem:[%s243 + $0x8] sm:$0xff] %vm246, %v301
        %vm304 = vcmask 57344
        %305 = vst.msk [vmem:[%s227] sm:$0x1] %vm304, %v267
        %306 = vst.msk [vmem:[%s233] sm:$0x1] %vm304, %v279
        %p307 = scmp.lt.s32.totalorder %s23, 1
        %s308 = scalar_select %p307, %s23, 1
        %s309 = smul.addr %s308, 2
        %s310 = smul.addr %s309, 8
        %s311 = scalar_lea.vmem %s3, %s310
        %s312 = sand.u32 %s125, 1
        %s313 = scalar_lea.sflag [#allocation3], %s312
        %s314 = sand.u32 %s125, 1
        %s315 = scalar_lea.vmem [#allocation2], %s314
        %s316 = sand.u32 %s151, 1
        %s317 = scalar_lea.sflag [#allocation5], %s316
        %s318 = sand.u32 %s151, 1
        %s319 = scalar_lea.vmem [#allocation4], %s318
        // Predicated region
        $region33: #{tpu_custom_call.1} parent=31 // pred_check
          %p320 = pneg %p109
        $region34: #{tpu_custom_call.1} parent=31 // pred_check_branch
          %322 = sbr.rel (%p320) target = $region36
        $region35: #{tpu_custom_call.1} parent=31 // pred_region
          _
        $region36: #{tpu_custom_call.1} parent=31 // pred_fallthru
          _
        // Predicated region
        $region37: #{tpu_custom_call.1} parent=31 // pred_check
          %p323 = pneg %p135
        $region38: #{tpu_custom_call.1} parent=31 // pred_check_branch
          %325 = sbr.rel (%p323) target = $region40
        $region39: #{tpu_custom_call.1} parent=31 // pred_region
          %s327 = ssub.s32 16, 16
          %328 = vsyncadd %s313, %s327
          %s329 = smul.addr %s23, 16
          %s330 = scalar_lea.hbm %s4, %s329
          %s332 = sshll.u32 %s315, 4
          %s333 = int_to_ptr.vmem [resolvable:$true] %s332
          %335 = dma.vmem_to_hbm [thread:$0]  %s333, 16, %s330, %s313
        $region40: #{tpu_custom_call.1} parent=31 // pred_fallthru
          _
        // Predicated region
        $region41: #{tpu_custom_call.1} parent=31 // pred_check
          %p336 = pneg %p161
        $region42: #{tpu_custom_call.1} parent=31 // pred_check_branch
          %338 = sbr.rel (%p336) target = $region44
        $region43: #{tpu_custom_call.1} parent=31 // pred_region
          %s340 = ssub.s32 16, 16
          %341 = vsyncadd %s317, %s340
          %s342 = smul.addr %s23, 16
          %s343 = scalar_lea.hbm %s5, %s342
          %s345 = sshll.u32 %s319, 4
          %s346 = int_to_ptr.vmem [resolvable:$true] %s345
          %348 = dma.vmem_to_hbm [thread:$0]  %s346, 16, %s343, %s317
        $region44: #{tpu_custom_call.1} parent=31 // pred_fallthru
          _
      $region32: #{tpu_custom_call.1} parent=5 // pred_fallthru
        _
      %p349 = scmp.le.s32.totalorder 2, %s18
      // Predicated region
      $region45: #{tpu_custom_call.1} parent=5 // pred_check
        %p350 = pneg %p349
      $region46: #{tpu_custom_call.1} parent=5 // pred_check_branch
        %352 = sbr.rel (%p350) target = $region48
      $region47: #{tpu_custom_call.1} parent=5 // pred_region
        %s353 = ssub.s32 %s18, 2
        // Predicated region
        $region49: #{tpu_custom_call.1} parent=47 // pred_check
          %p354 = pneg %p115
        $region50: #{tpu_custom_call.1} parent=47 // pred_check_branch
          %356 = sbr.rel (%p354) target = $region52
        $region51: #{tpu_custom_call.1} parent=47 // pred_region
          %p357 = scmp.lt.s32.totalorder %s24, 1
          %s358 = scalar_select %p357, %s24, 1
          %s359 = smul.addr %s358, 2
          %s360 = smul.addr %s359, 8
          %s361 = scalar_lea.vmem %s3, %s360
        $region52: #{tpu_custom_call.1} parent=47 // pred_fallthru
          _
        // Predicated region
        $region53: #{tpu_custom_call.1} parent=47 // pred_check
          %p362 = pneg %p141
        $region54: #{tpu_custom_call.1} parent=47 // pred_check_branch
          %364 = sbr.rel (%p362) target = $region56
        $region55: #{tpu_custom_call.1} parent=47 // pred_region
          %s365 = sand.u32 %s126, 1
          %s366 = scalar_lea.sflag [#allocation3], %s365
          %s367 = sand.u32 %s126, 1
          %s368 = scalar_lea.vmem [#allocation2], %s367
          %369 = dma.done %s366, 16
        $region56: #{tpu_custom_call.1} parent=47 // pred_fallthru
          _
        // Predicated region
        $region57: #{tpu_custom_call.1} parent=47 // pred_check
          %p370 = pneg %p167
        $region58: #{tpu_custom_call.1} parent=47 // pred_check_branch
          %372 = sbr.rel (%p370) target = $region60
        $region59: #{tpu_custom_call.1} parent=47 // pred_region
          %s373 = sand.u32 %s152, 1
          %s374 = scalar_lea.sflag [#allocation5], %s373
          %s375 = sand.u32 %s152, 1
          %s376 = scalar_lea.vmem [#allocation4], %s375
          %377 = dma.done %s374, 16
        $region60: #{tpu_custom_call.1} parent=47 // pred_fallthru
          _
      $region48: #{tpu_custom_call.1} parent=5 // pred_fallthru
        _
    $region6: #{tpu_custom_call.1} parent=1 // loop_footer
      %s22 = sadd.s32 1, %s18
    $region7: #{tpu_custom_call.1} parent=1 // loop_footer_branch
      %17 = sbr.rel target = $region3
    $region8: #{tpu_custom_call.1} parent=1 // loop_exit
      _
    %378 = vsyncpa [#allocation3], 1
    %s379 = scalar_lea.sflag [#allocation3], 1
    %380 = vsyncpa %s379, 1
    %381 = vsyncpa [#allocation5], 1
    %s382 = scalar_lea.sflag [#allocation5], 1
    %383 = vsyncpa %s382, 1

</llo_original>
